<compile_context>
chip_gen: v7x
topology: tpu7x:2x2x1
jax: 0.10.0
libtpu: 0.0.40
codegen_flags: <defaults>
</compile_context>

<pallas_src>
import jax
import jax.numpy as jnp
from jax.experimental import pallas as pl
from jax.experimental.pallas import tpu as pltpu

HIDDEN_SIZE = 64
INPUT_SIZE = 2
NUM_CLASSES = 2
NUM_LAYERS = 1  # single-layer RNN (matches the module)


def _rnn_kernel(x_ref, w_ih_t_ref, b_ref, w_hh_t_ref, w_fc_t_ref, b_fc_ref,
                out_ref, xp_ref):
    """Single-invocation RNN forward.

    x_ref:      (T*Bp, I)   time-major, batch-padded input (flattened)
    w_ih_t_ref: (I, H)      W_ih^T
    b_ref:      (1, H)      b_ih + b_hh (folded)
    w_hh_t_ref: (H, H)      W_hh^T
    w_fc_t_ref: (H, Cp)     W_fc^T padded to lane-dense Cp
    b_fc_ref:   (1, Cp)     b_fc padded
    out_ref:    (Bp, Cp)    padded logits
    xp_ref:     (T*Bp, H)   VMEM scratch for the precomputed input projection
    """
    Bp = out_ref.shape[0]
    H = w_hh_t_ref.shape[0]
    T = xp_ref.shape[0] // Bp

    # Input projection for ALL timesteps in one MXU call (off the serial chain),
    # with both biases folded in.
    xp_ref[...] = (
        jnp.dot(x_ref[...], w_ih_t_ref[...], preferred_element_type=jnp.float32)
        + b_ref[...]
    )

    w_hh_t = w_hh_t_ref[...]  # stays resident across the recurrence

    def step(t, h):
        off = pl.multiple_of(t * Bp, 8)            # sublane-aligned row offset
        xp_t = xp_ref[pl.ds(off, Bp), :]           # (Bp, H)
        return jnp.tanh(
            xp_t + jnp.dot(h, w_hh_t, preferred_element_type=jnp.float32))

    h_last = jax.lax.fori_loop(
        0, T, step, jnp.zeros((Bp, H), jnp.float32), unroll=True)

    # FC head on the last hidden state; lane-dense (Bp, Cp) unmasked store.
    out_ref[...] = (
        jnp.dot(h_last, w_fc_t_ref[...], preferred_element_type=jnp.float32)
        + b_fc_ref[...]
    ).astype(out_ref.dtype)


def rnn_forward(x, params):
    """x: (B, T, input_size) float32 -> logits (B, num_classes) float32."""
    w_ih, w_hh, b_ih, b_hh, w_fc, b_fc = params
    B, T, I = x.shape
    H = w_hh.shape[0]
    C = w_fc.shape[0]

    B_pad = max(8, ((B + 7) // 8) * 8)      # sublane-dense batch
    C_pad = max(128, ((C + 127) // 128) * 128)  # lane-dense FC output

    # Pure layout plumbing in the wrapper: time-major, pad batch, flatten so the
    # kernel can do the whole input projection as one (T*Bp, I) @ (I, H) matmul.
    x_tm = jnp.transpose(x, (1, 0, 2))                        # (T, B, I)
    x_tm = jnp.pad(x_tm, ((0, 0), (0, B_pad - B), (0, 0)))     # (T, Bp, I)
    x2 = x_tm.reshape(T * B_pad, I)                            # (T*Bp, I)

    w_ih_t = jnp.transpose(w_ih)                               # (I, H)
    w_hh_t = jnp.transpose(w_hh)                               # (H, H)
    b = (b_ih + b_hh).reshape(1, H)                            # (1, H)
    w_fc_t = jnp.pad(jnp.transpose(w_fc), ((0, 0), (0, C_pad - C)))  # (H, Cp)
    b_fc_p = jnp.pad(b_fc, (0, C_pad - C)).reshape(1, C_pad)         # (1, Cp)

    out_pad = pl.pallas_call(
        _rnn_kernel,
        out_shape=jax.ShapeDtypeStruct((B_pad, C_pad), jnp.float32),
        in_specs=[pl.BlockSpec(memory_space=pltpu.MemorySpace.VMEM)] * 6,
        out_specs=pl.BlockSpec(memory_space=pltpu.MemorySpace.VMEM),
        scratch_shapes=[pltpu.VMEM((T * B_pad, H), jnp.float32)],
    )(x2, w_ih_t, b, w_hh_t, w_fc_t, b_fc_p)

    return out_pad[:B, :C]


def init_params(key, input_size=INPUT_SIZE, hidden_size=HIDDEN_SIZE,
                num_classes=NUM_CLASSES):
    """Deterministic init mirroring PyTorch's U(-1/sqrt(H), 1/sqrt(H))."""
    ks = jax.random.split(key, 6)
    bound = 1.0 / jnp.sqrt(hidden_size)
    w_ih = jax.random.uniform(ks[0], (hidden_size, input_size),
                              minval=-bound, maxval=bound, dtype=jnp.float32)
    w_hh = jax.random.uniform(ks[1], (hidden_size, hidden_size),
                              minval=-bound, maxval=bound, dtype=jnp.float32)
    b_ih = jax.random.uniform(ks[2], (hidden_size,),
                              minval=-bound, maxval=bound, dtype=jnp.float32)
    b_hh = jax.random.uniform(ks[3], (hidden_size,),
                              minval=-bound, maxval=bound, dtype=jnp.float32)
    w_fc = jax.random.uniform(ks[4], (num_classes, hidden_size),
                              minval=-bound, maxval=bound, dtype=jnp.float32)
    b_fc = jax.random.uniform(ks[5], (num_classes,),
                              minval=-bound, maxval=bound, dtype=jnp.float32)
    return (w_ih, w_hh, b_ih, b_hh, w_fc, b_fc)


def rnn_reference(x, params):
    """Pure-JAX reference of the PyTorch forward pass."""
    w_ih, w_hh, b_ih, b_hh, w_fc, b_fc = params
    B = x.shape[0]
    h = jnp.zeros((B, w_hh.shape[0]), jnp.float32)

    def step(h, x_t):
        h = jnp.tanh(x_t @ w_ih.T + b_ih + h @ w_hh.T + b_hh)
        return h, None

    h_last, _ = jax.lax.scan(step, h, jnp.transpose(x, (1, 0, 2)))
    return h_last @ w_fc.T + b_fc


if __name__ == "__main__":
    key = jax.random.PRNGKey(0)
    k_param, k_x = jax.random.split(key)

    B, T = 2, 8
    x = jax.random.normal(k_x, (B, T, INPUT_SIZE), dtype=jnp.float32)
    params = init_params(k_param)

    out = rnn_forward(x, params)
    out = jax.block_until_ready(out)

    ref = rnn_reference(x, params)
    assert out.shape == (B, NUM_CLASSES)
    assert jnp.allclose(out, ref, atol=1e-5, rtol=1e-5), (out, ref)

    print("KERNEL_OK")
</pallas_src>

<mosaic_0001>
module attributes {stable_mosaic.version = 11 : i64} {
  func.func @_rnn_kernel(%arg0: memref<64x2xf32, #tpu.memory_space<vmem>>, %arg1: memref<2x64xf32, #tpu.memory_space<vmem>>, %arg2: memref<1x64xf32, #tpu.memory_space<vmem>>, %arg3: memref<64x64xf32, #tpu.memory_space<vmem>>, %arg4: memref<64x128xf32, #tpu.memory_space<vmem>>, %arg5: memref<1x128xf32, #tpu.memory_space<vmem>>, %arg6: memref<8x128xf32, #tpu.memory_space<vmem>>, %arg7: memref<64x64xf32, #tpu.memory_space<vmem>>) attributes {dimension_semantics = [], scalar_prefetch = 0 : i64, scratch_operands = 1 : i64, tpu.core_type = #tpu.core_type<tc>} {
    %c0 = arith.constant 0 : index
    %c0_0 = arith.constant 0 : index
    %0 = vector.load %arg0[%c0, %c0_0] : memref<64x2xf32, #tpu.memory_space<vmem>>, vector<64x2xf32>
    %c0_1 = arith.constant 0 : index
    %c0_2 = arith.constant 0 : index
    %1 = vector.load %arg1[%c0_1, %c0_2] : memref<2x64xf32, #tpu.memory_space<vmem>>, vector<2x64xf32>
    %cst = arith.constant dense<0.000000e+00> : vector<64x64xf32>
    %2 = tpu.matmul %0, %1, %cst {dimension_numbers = #tpu.dot_dimension_numbers<[1], [0], [0], [1], [0, 0, 1, 1], [], []>} : vector<64x2xf32>, vector<2x64xf32>, vector<64x64xf32> -> vector<64x64xf32>
    %c0_3 = arith.constant 0 : index
    %c0_4 = arith.constant 0 : index
    %3 = vector.load %arg2[%c0_3, %c0_4] : memref<1x64xf32, #tpu.memory_space<vmem>>, vector<1x64xf32>
    %4 = vector.broadcast %3 : vector<1x64xf32> to vector<64x64xf32>
    %5 = arith.addf %2, %4 : vector<64x64xf32>
    %c0_5 = arith.constant 0 : index
    %c0_6 = arith.constant 0 : index
    %6 = vector.load %arg7[%c0_5, %c0_6] : memref<64x64xf32, #tpu.memory_space<vmem>>, vector<64x64xf32>
    tpu.vector_store %arg7[%c0_5, %c0_6], %5 {strides = array<i32>} : memref<64x64xf32, #tpu.memory_space<vmem>>, vector<64x64xf32>,
    %c0_7 = arith.constant 0 : index
    %c0_8 = arith.constant 0 : index
    %7 = vector.load %arg3[%c0_7, %c0_8] : memref<64x64xf32, #tpu.memory_space<vmem>>, vector<64x64xf32>
    %cst_9 = arith.constant 0.000000e+00 : f32
    %8 = vector.broadcast %cst_9 : f32 to vector<8x64xf32>
    %c0_i32 = arith.constant 0 : i32
    %c8_i32 = arith.constant 8 : i32
    %9 = arith.muli %c0_i32, %c8_i32 : i32
    %10 = tpu.assume_multiple %9, 8 : i32
    %11 = arith.index_cast %10 : i32 to index
    %c0_10 = arith.constant 0 : index
    %12 = vector.load %arg7[%11, %c0_10] : memref<64x64xf32, #tpu.memory_space<vmem>>, vector<8x64xf32>
    %cst_11 = arith.constant dense<0.000000e+00> : vector<8x64xf32>
    %13 = tpu.matmul %8, %7, %cst_11 {dimension_numbers = #tpu.dot_dimension_numbers<[1], [0], [0], [1], [0, 0, 1, 1], [], []>} : vector<8x64xf32>, vector<64x64xf32>, vector<8x64xf32> -> vector<8x64xf32>
    %14 = arith.addf %12, %13 : vector<8x64xf32>
    %15 = math.tanh %14 : vector<8x64xf32>
    %c1_i32 = arith.constant 1 : i32
    %c8_i32_12 = arith.constant 8 : i32
    %16 = arith.muli %c1_i32, %c8_i32_12 : i32
    %17 = tpu.assume_multiple %16, 8 : i32
    %18 = arith.index_cast %17 : i32 to index
    %c0_13 = arith.constant 0 : index
    %19 = vector.load %arg7[%18, %c0_13] : memref<64x64xf32, #tpu.memory_space<vmem>>, vector<8x64xf32>
    %cst_14 = arith.constant dense<0.000000e+00> : vector<8x64xf32>
    %20 = tpu.matmul %15, %7, %cst_14 {dimension_numbers = #tpu.dot_dimension_numbers<[1], [0], [0], [1], [0, 0, 1, 1], [], []>} : vector<8x64xf32>, vector<64x64xf32>, vector<8x64xf32> -> vector<8x64xf32>
    %21 = arith.addf %19, %20 : vector<8x64xf32>
    %22 = math.tanh %21 : vector<8x64xf32>
    %c2_i32 = arith.constant 2 : i32
    %c8_i32_15 = arith.constant 8 : i32
    %23 = arith.muli %c2_i32, %c8_i32_15 : i32
    %24 = tpu.assume_multiple %23, 8 : i32
    %25 = arith.index_cast %24 : i32 to index
    %c0_16 = arith.constant 0 : index
    %26 = vector.load %arg7[%25, %c0_16] : memref<64x64xf32, #tpu.memory_space<vmem>>, vector<8x64xf32>
    %cst_17 = arith.constant dense<0.000000e+00> : vector<8x64xf32>
    %27 = tpu.matmul %22, %7, %cst_17 {dimension_numbers = #tpu.dot_dimension_numbers<[1], [0], [0], [1], [0, 0, 1, 1], [], []>} : vector<8x64xf32>, vector<64x64xf32>, vector<8x64xf32> -> vector<8x64xf32>
    %28 = arith.addf %26, %27 : vector<8x64xf32>
    %29 = math.tanh %28 : vector<8x64xf32>
    %c3_i32 = arith.constant 3 : i32
    %c8_i32_18 = arith.constant 8 : i32
    %30 = arith.muli %c3_i32, %c8_i32_18 : i32
    %31 = tpu.assume_multiple %30, 8 : i32
    %32 = arith.index_cast %31 : i32 to index
    %c0_19 = arith.constant 0 : index
    %33 = vector.load %arg7[%32, %c0_19] : memref<64x64xf32, #tpu.memory_space<vmem>>, vector<8x64xf32>
    %cst_20 = arith.constant dense<0.000000e+00> : vector<8x64xf32>
    %34 = tpu.matmul %29, %7, %cst_20 {dimension_numbers = #tpu.dot_dimension_numbers<[1], [0], [0], [1], [0, 0, 1, 1], [], []>} : vector<8x64xf32>, vector<64x64xf32>, vector<8x64xf32> -> vector<8x64xf32>
    %35 = arith.addf %33, %34 : vector<8x64xf32>
    %36 = math.tanh %35 : vector<8x64xf32>
    %c4_i32 = arith.constant 4 : i32
    %c8_i32_21 = arith.constant 8 : i32
    %37 = arith.muli %c4_i32, %c8_i32_21 : i32
    %38 = tpu.assume_multiple %37, 8 : i32
    %39 = arith.index_cast %38 : i32 to index
    %c0_22 = arith.constant 0 : index
    %40 = vector.load %arg7[%39, %c0_22] : memref<64x64xf32, #tpu.memory_space<vmem>>, vector<8x64xf32>
    %cst_23 = arith.constant dense<0.000000e+00> : vector<8x64xf32>
    %41 = tpu.matmul %36, %7, %cst_23 {dimension_numbers = #tpu.dot_dimension_numbers<[1], [0], [0], [1], [0, 0, 1, 1], [], []>} : vector<8x64xf32>, vector<64x64xf32>, vector<8x64xf32> -> vector<8x64xf32>
    %42 = arith.addf %40, %41 : vector<8x64xf32>
    %43 = math.tanh %42 : vector<8x64xf32>
    %c5_i32 = arith.constant 5 : i32
    %c8_i32_24 = arith.constant 8 : i32
    %44 = arith.muli %c5_i32, %c8_i32_24 : i32
    %45 = tpu.assume_multiple %44, 8 : i32
    %46 = arith.index_cast %45 : i32 to index
    %c0_25 = arith.constant 0 : index
    %47 = vector.load %arg7[%46, %c0_25] : memref<64x64xf32, #tpu.memory_space<vmem>>, vector<8x64xf32>
    %cst_26 = arith.constant dense<0.000000e+00> : vector<8x64xf32>
    %48 = tpu.matmul %43, %7, %cst_26 {dimension_numbers = #tpu.dot_dimension_numbers<[1], [0], [0], [1], [0, 0, 1, 1], [], []>} : vector<8x64xf32>, vector<64x64xf32>, vector<8x64xf32> -> vector<8x64xf32>
    %49 = arith.addf %47, %48 : vector<8x64xf32>
    %50 = math.tanh %49 : vector<8x64xf32>
    %c6_i32 = arith.constant 6 : i32
    %c8_i32_27 = arith.constant 8 : i32
    %51 = arith.muli %c6_i32, %c8_i32_27 : i32
    %52 = tpu.assume_multiple %51, 8 : i32
    %53 = arith.index_cast %52 : i32 to index
    %c0_28 = arith.constant 0 : index
    %54 = vector.load %arg7[%53, %c0_28] : memref<64x64xf32, #tpu.memory_space<vmem>>, vector<8x64xf32>
    %cst_29 = arith.constant dense<0.000000e+00> : vector<8x64xf32>
    %55 = tpu.matmul %50, %7, %cst_29 {dimension_numbers = #tpu.dot_dimension_numbers<[1], [0], [0], [1], [0, 0, 1, 1], [], []>} : vector<8x64xf32>, vector<64x64xf32>, vector<8x64xf32> -> vector<8x64xf32>
    %56 = arith.addf %54, %55 : vector<8x64xf32>
    %57 = math.tanh %56 : vector<8x64xf32>
    %c7_i32 = arith.constant 7 : i32
    %c8_i32_30 = arith.constant 8 : i32
    %58 = arith.muli %c7_i32, %c8_i32_30 : i32
    %59 = tpu.assume_multiple %58, 8 : i32
    %60 = arith.index_cast %59 : i32 to index
    %c0_31 = arith.constant 0 : index
    %61 = vector.load %arg7[%60, %c0_31] : memref<64x64xf32, #tpu.memory_space<vmem>>, vector<8x64xf32>
    %cst_32 = arith.constant dense<0.000000e+00> : vector<8x64xf32>
    %62 = tpu.matmul %57, %7, %cst_32 {dimension_numbers = #tpu.dot_dimension_numbers<[1], [0], [0], [1], [0, 0, 1, 1], [], []>} : vector<8x64xf32>, vector<64x64xf32>, vector<8x64xf32> -> vector<8x64xf32>
    %63 = arith.addf %61, %62 : vector<8x64xf32>
    %64 = math.tanh %63 : vector<8x64xf32>
    %c8_i32_33 = arith.constant 8 : i32
    %c0_34 = arith.constant 0 : index
    %c0_35 = arith.constant 0 : index
    %65 = vector.load %arg4[%c0_34, %c0_35] : memref<64x128xf32, #tpu.memory_space<vmem>>, vector<64x128xf32>
    %cst_36 = arith.constant dense<0.000000e+00> : vector<8x128xf32>
    %66 = tpu.matmul %64, %65, %cst_36 {dimension_numbers = #tpu.dot_dimension_numbers<[1], [0], [0], [1], [0, 0, 1, 1], [], []>} : vector<8x64xf32>, vector<64x128xf32>, vector<8x128xf32> -> vector<8x128xf32>
    %c0_37 = arith.constant 0 : index
    %c0_38 = arith.constant 0 : index
    %67 = vector.load %arg5[%c0_37, %c0_38] : memref<1x128xf32, #tpu.memory_space<vmem>>, vector<1x128xf32>
    %68 = vector.broadcast %67 : vector<1x128xf32> to vector<8x128xf32>
    %69 = arith.addf %66, %68 : vector<8x128xf32>
    %c0_39 = arith.constant 0 : index
    %c0_40 = arith.constant 0 : index
    %70 = vector.load %arg6[%c0_39, %c0_40] : memref<8x128xf32, #tpu.memory_space<vmem>>, vector<8x128xf32>
    tpu.vector_store %arg6[%c0_39, %c0_40], %69 {strides = array<i32>} : memref<8x128xf32, #tpu.memory_space<vmem>>, vector<8x128xf32>,
    return
  }
}

</mosaic_0001>

<llo_original>
// kernel: tpu_custom_call.1
$region0: #{tpu_custom_call.1}
  #allocation0 [shape = 'u32[]', space=smem, size = 0x4, offset = 0x4, fixed_abs, tag = 'smem constant byte address 0x4 - core index']
  #allocation1 [shape = 'u32[144,128]{1,0:T(1,128)}', space=vmem, size = 0x12000, scoped, tag = 'internal scratch']
  #allocation2 [shape = 'f32[64,64]{1,0:T(8,128)}', space=vmem, size = 0x8000, scoped, tag = 'scratch operand']
  %s0 = inlined_call_operand.vmem [shape: f32[64,2], index: 0, kind: input, shape index: {}]
  %s1 = inlined_call_operand.vmem [shape: f32[2,64], index: 1, kind: input, shape index: {}]
  %s2 = inlined_call_operand.vmem [shape: f32[1,64], index: 2, kind: input, shape index: {}]
  %s3 = inlined_call_operand.vmem [shape: f32[64,64], index: 3, kind: input, shape index: {}]
  %s4 = inlined_call_operand.hbm [shape: f32[64,128], index: 4, kind: input, shape index: {}]
  %s5 = inlined_call_operand.vmem [shape: f32[1,128], index: 5, kind: input, shape index: {}]
  %s6 = inlined_call_operand.hbm [shape: f32[8,128], index: 6, kind: output, shape index: {}]
  %s7 = sld [smem:[#allocation0]]
  $region38: #{tpu_custom_call.1} parent=0
    _
  %s9 = ssub.s32 1, %s7
  %s10 = scalar_select 0, %s9, %s7
  $region1: #{tpu_custom_call.1} parent=0
    #allocation3 [shape = 'u8[32768]{0}', space=vmem, size = 0x8000, scoped, tag = 'input window, operand 4, single buffered']
    #allocation4 [shape = 's32[1]{0}', space=sflag, size = 0x4, scoped, tag = 'scoped memory for tpu_custom_call.1']
    #allocation5 [shape = 's32[1]{0}', space=sflag, size = 0x4, scoped, tag = 'scoped memory for tpu_custom_call.1']
    #allocation6 [shape = 'u8[4096]{0}', space=vmem, size = 0x1000, scoped, tag = 'output window, operand 0, single buffered']
    %11 = vsyncpa [#allocation4], 0
    %12 = vsyncpa [#allocation5], 0
    // Predicated region
    $region2: #{tpu_custom_call.1} parent=1 // pred_check
      _
    $region3: #{tpu_custom_call.1} parent=1 // pred_check_branch
      %14 = sbr.rel (0) target = $region5
    $region4: #{tpu_custom_call.1} parent=1 // pred_region
      _
    $region5: #{tpu_custom_call.1} parent=1 // pred_fallthru
      _
    // Predicated region
    $region6: #{tpu_custom_call.1} parent=1 // pred_check
      _
    $region7: #{tpu_custom_call.1} parent=1 // pred_check_branch
      %16 = sbr.rel (0) target = $region9
    $region8: #{tpu_custom_call.1} parent=1 // pred_region
      _
    $region9: #{tpu_custom_call.1} parent=1 // pred_fallthru
      _
    // Predicated region
    $region10: #{tpu_custom_call.1} parent=1 // pred_check
      _
    $region11: #{tpu_custom_call.1} parent=1 // pred_check_branch
      %18 = sbr.rel (0) target = $region13
    $region12: #{tpu_custom_call.1} parent=1 // pred_region
      _
    $region13: #{tpu_custom_call.1} parent=1 // pred_fallthru
      _
    // Predicated region
    $region14: #{tpu_custom_call.1} parent=1 // pred_check
      _
    $region15: #{tpu_custom_call.1} parent=1 // pred_check_branch
      %20 = sbr.rel (0) target = $region17
    $region16: #{tpu_custom_call.1} parent=1 // pred_region
      _
    $region17: #{tpu_custom_call.1} parent=1 // pred_fallthru
      _
    // Predicated region
    $region18: #{tpu_custom_call.1} parent=1 // pred_check
      _
    $region19: #{tpu_custom_call.1} parent=1 // pred_check_branch
      %22 = sbr.rel (0) target = $region21
    $region20: #{tpu_custom_call.1} parent=1 // pred_region
      %s24 = ssub.s32 1024, 1024
      %25 = vsyncadd [#allocation4], %s24
      %s26 = sshll.u32 [#allocation3], 4
      %s27 = int_to_ptr.vmem [resolvable:$true] %s26
      %32 = dma.hbm_to_vmem [thread:$0]  %s4, 1024, %s27, [#allocation4], 128, 128, 8
    $region21: #{tpu_custom_call.1} parent=1 // pred_fallthru
      _
    // Predicated region
    $region22: #{tpu_custom_call.1} parent=1 // pred_check
      _
    $region23: #{tpu_custom_call.1} parent=1 // pred_check_branch
      %34 = sbr.rel (0) target = $region25
    $region24: #{tpu_custom_call.1} parent=1 // pred_region
      _
    $region25: #{tpu_custom_call.1} parent=1 // pred_fallthru
      _
    // Predicated region
    $region26: #{tpu_custom_call.1} parent=1 // pred_check
      _
    $region27: #{tpu_custom_call.1} parent=1 // pred_check_branch
      %36 = sbr.rel (0) target = $region29
    $region28: #{tpu_custom_call.1} parent=1 // pred_region
      %37 = dma.done [#allocation4], 1024
    $region29: #{tpu_custom_call.1} parent=1 // pred_fallthru
      _
    %v38 = vld [vmem:[%s0] sm:$0xff]
    %v39 = vld [vmem:[%s0 + $0x8] sm:$0xff]
    %v40 = vld [vmem:[%s0 + $0x10] sm:$0xff]
    %v41 = vld [vmem:[%s0 + $0x18] sm:$0xff]
    %v42 = vld [vmem:[%s0 + $0x20] sm:$0xff]
    %v43 = vld [vmem:[%s0 + $0x28] sm:$0xff]
    %v44 = vld [vmem:[%s0 + $0x30] sm:$0xff]
    %v45 = vld [vmem:[%s0 + $0x38] sm:$0xff]
    %v46 = vld [vmem:[%s1] sm:$0x3]
    %v47 = vld [vmem:[%s2] sm:$0x1]
    %v49 = vlaneseq
    %v50 = vshrl.u32 %v49, 7
    %v51 = vsub.s32 0, %v50
    %v52 = vrot.slane %v47, %v51
    %vm54 = vcmask 15360
    %v56 = vsel %vm54, %v38, 0
    %v59 = vsel %vm54, %v39, 0
    %v62 = vsel %vm54, %v40, 0
    %v65 = vsel %vm54, %v41, 0
    %v68 = vsel %vm54, %v42, 0
    %v71 = vsel %vm54, %v43, 0
    %v74 = vsel %vm54, %v44, 0
    %v77 = vsel %vm54, %v45, 0
    %vm79 = vcmask 1041408
    %v81 = vsel %vm79, %v46, 0
    %83 = vmatprep.subr.mxu0 0.0
    %84 = vmatpush1.msra.mxu0 %v81
    %85 = vmatprep.subr.mxu0 0.0
    %86 = vmatpush1.msra.mxu0 0.0
    %87 = vmatprep.subr.mxu0 0.0
    %88 = vmatpush1.msra.mxu0 0.0
    %89 = vmatprep.subr.mxu0 0.0
    %90 = vmatpush1.msra.mxu0 0.0
    %91 = vmatprep.subr.mxu0 0.0
    %92 = vmatpush1.msra.mxu0 0.0
    %93 = vmatprep.subr.mxu0 0.0
    %94 = vmatpush1.msra.mxu0 0.0
    %95 = vmatprep.subr.mxu0 0.0
    %96 = vmatpush1.msra.mxu0 0.0
    %97 = vmatprep.subr.mxu0 0.0
    %98 = vmatpush1.msra.mxu0 0.0
    %99 = vmatprep.subr.mxu0 0.0
    %100 = vmatpush1.msra.mxu0 0.0
    %101 = vmatprep.subr.mxu0 0.0
    %102 = vmatpush1.msra.mxu0 0.0
    %103 = vmatprep.subr.mxu0 0.0
    %104 = vmatpush1.msra.mxu0 0.0
    %105 = vmatprep.subr.mxu0 0.0
    %106 = vmatpush1.msra.mxu0 0.0
    %107 = vmatprep.subr.mxu0 0.0
    %108 = vmatpush1.msra.mxu0 0.0
    %109 = vmatprep.subr.mxu0 0.0
    %110 = vmatpush1.msra.mxu0 0.0
    %111 = vmatprep.subr.mxu0 0.0
    %112 = vmatpush1.msra.mxu0 0.0
    %113 = vmatprep.subr.mxu0 0.0
    %114 = vmatpush1.msra.mxu0 0.0
    %115 = vmatprep.subr.mxu0 0.0
    %116 = vmatpush1.msra.mxu0 0.0
    %117 = vmatprep.subr.mxu0 0.0
    %118 = vmatpush1.msra.mxu0 0.0
    %119 = vmatprep.subr.mxu0 0.0
    %120 = vmatpush1.msra.mxu0 0.0
    %121 = vmatprep.subr.mxu0 0.0
    %122 = vmatpush1.msra.mxu0 0.0
    %123 = vmatprep.subr.mxu0 0.0
    %124 = vmatpush1.msra.mxu0 0.0
    %125 = vmatprep.subr.mxu0 0.0
    %126 = vmatpush1.msra.mxu0 0.0
    %127 = vmatprep.subr.mxu0 0.0
    %128 = vmatpush1.msra.mxu0 0.0
    %129 = vmatprep.subr.mxu0 0.0
    %130 = vmatpush1.msra.mxu0 0.0
    %131 = vmatprep.subr.mxu0 0.0
    %132 = vmatpush1.msra.mxu0 0.0
    %133 = vmatprep.subr.mxu0 0.0
    %134 = vmatpush1.msra.mxu0 0.0
    %135 = vmatprep.subr.mxu0 0.0
    %136 = vmatpush1.msra.mxu0 0.0
    %137 = vmatprep.subr.mxu0 0.0
    %138 = vmatpush1.msra.mxu0 0.0
    %139 = vmatprep.subr.mxu0 0.0
    %140 = vmatpush1.msra.mxu0 0.0
    %141 = vmatprep.subr.mxu0 0.0
    %142 = vmatpush1.msra.mxu0 0.0
    %143 = vmatprep.subr.mxu0 0.0
    %144 = vmatpush1.msra.mxu0 0.0
    %145 = vmatprep.subr.mxu0 0.0
    %146 = vmatpush1.msra.mxu0 0.0
    %147 = vmatprep.mubr.f32.mxu0 0.0
    %148 = vmatmul.mubr.f32.gmra.mrb[0].mxu0 %v56
    %v149 = vpop.f32.mrb[0].mxu0
    %v150 = vadd.f32 %v52, %v149
    %v151 = vpop.f32.mrb[0].mxu0
    %152 = vmatprep.mubr.f32.mxu0 0.0
    %153 = vmatmul.mubr.f32.gmra.mrb[0].mxu0 %v59
    %v154 = vpop.f32.mrb[0].mxu0
    %v155 = vadd.f32 %v52, %v154
    %v156 = vpop.f32.mrb[0].mxu0
    %157 = vmatprep.mubr.f32.mxu0 0.0
    %158 = vmatmul.mubr.f32.gmra.mrb[0].mxu0 %v62
    %v159 = vpop.f32.mrb[0].mxu0
    %v160 = vadd.f32 %v52, %v159
    %v161 = vpop.f32.mrb[0].mxu0
    %162 = vmatprep.mubr.f32.mxu0 0.0
    %163 = vmatmul.mubr.f32.gmra.mrb[0].mxu0 %v65
    %v164 = vpop.f32.mrb[0].mxu0
    %v165 = vadd.f32 %v52, %v164
    %v166 = vpop.f32.mrb[0].mxu0
    %167 = vmatprep.mubr.f32.mxu0 0.0
    %168 = vmatmul.mubr.f32.gmra.mrb[0].mxu0 %v68
    %v169 = vpop.f32.mrb[0].mxu0
    %v170 = vadd.f32 %v52, %v169
    %v171 = vpop.f32.mrb[0].mxu0
    %172 = vmatprep.mubr.f32.mxu0 0.0
    %173 = vmatmul.mubr.f32.gmra.mrb[0].mxu0 %v71
    %v174 = vpop.f32.mrb[0].mxu0
    %v175 = vadd.f32 %v52, %v174
    %v176 = vpop.f32.mrb[0].mxu0
    %177 = vmatprep.mubr.f32.mxu0 0.0
    %178 = vmatmul.mubr.f32.gmra.mrb[0].mxu0 %v74
    %v179 = vpop.f32.mrb[0].mxu0
    %v180 = vadd.f32 %v52, %v179
    %v181 = vpop.f32.mrb[0].mxu0
    %182 = vmatprep.mubr.f32.mxu0 0.0
    %183 = vmatmul.mubr.f32.gmra.mrb[0].mxu0 %v77
    %v184 = vpop.f32.mrb[0].mxu0
    %v185 = vadd.f32 %v52, %v184
    %v186 = vpop.f32.mrb[0].mxu0
    %187 = vdwg.mxu0
    %vm188 = vcmask 523264
    %189 = vst.msk [vmem:[#allocation2] sm:$0xff] %vm188, %v150
    %190 = vst.msk [vmem:[#allocation2 + $0x8] sm:$0xff] %vm188, %v155
    %191 = vst.msk [vmem:[#allocation2 + $0x10] sm:$0xff] %vm188, %v160
    %192 = vst.msk [vmem:[#allocation2 + $0x18] sm:$0xff] %vm188, %v165
    %193 = vst.msk [vmem:[#allocation2 + $0x20] sm:$0xff] %vm188, %v170
    %194 = vst.msk [vmem:[#allocation2 + $0x28] sm:$0xff] %vm188, %v175
    %195 = vst.msk [vmem:[#allocation2 + $0x30] sm:$0xff] %vm188, %v180
    %196 = vst.msk [vmem:[#allocation2 + $0x38] sm:$0xff] %vm188, %v185
    %v197 = vld [vmem:[%s3] sm:$0xff]
    %v198 = vld [vmem:[%s3 + $0x8] sm:$0xff]
    %v199 = vld [vmem:[%s3 + $0x10] sm:$0xff]
    %v200 = vld [vmem:[%s3 + $0x18] sm:$0xff]
    %v201 = vld [vmem:[%s3 + $0x20] sm:$0xff]
    %v202 = vld [vmem:[%s3 + $0x28] sm:$0xff]
    %v203 = vld [vmem:[%s3 + $0x30] sm:$0xff]
    %v204 = vld [vmem:[%s3 + $0x38] sm:$0xff]
    %v205 = vld [vmem:[#allocation2] sm:$0xff]
    %v207 = vsel %vm188, 0.0, 0
    %209 = vmatprep.subr.mxu0 0.0
    %210 = vmatpush1.msra.mxu0 %v197
    %211 = vmatprep.subr.mxu0 0.0
    %212 = vmatpush1.msra.mxu0 %v198
    %213 = vmatprep.subr.mxu0 0.0
    %214 = vmatpush1.msra.mxu0 %v199
    %215 = vmatprep.subr.mxu0 0.0
    %216 = vmatpush1.msra.mxu0 %v200
    %217 = vmatprep.subr.mxu0 0.0
    %218 = vmatpush1.msra.mxu0 %v201
    %219 = vmatprep.subr.mxu0 0.0
    %220 = vmatpush1.msra.mxu0 %v202
    %221 = vmatprep.subr.mxu0 0.0
    %222 = vmatpush1.msra.mxu0 %v203
    %223 = vmatprep.subr.mxu0 0.0
    %224 = vmatpush1.msra.mxu0 %v204
    %225 = vmatprep.subr.mxu0 0.0
    %226 = vmatpush1.msra.mxu0 0.0
    %227 = vmatprep.subr.mxu0 0.0
    %228 = vmatpush1.msra.mxu0 0.0
    %229 = vmatprep.subr.mxu0 0.0
    %230 = vmatpush1.msra.mxu0 0.0
    %231 = vmatprep.subr.mxu0 0.0
    %232 = vmatpush1.msra.mxu0 0.0
    %233 = vmatprep.subr.mxu0 0.0
    %234 = vmatpush1.msra.mxu0 0.0
    %235 = vmatprep.subr.mxu0 0.0
    %236 = vmatpush1.msra.mxu0 0.0
    %237 = vmatprep.subr.mxu0 0.0
    %238 = vmatpush1.msra.mxu0 0.0
    %239 = vmatprep.subr.mxu0 0.0
    %240 = vmatpush1.msra.mxu0 0.0
    %241 = vmatprep.subr.mxu0 0.0
    %242 = vmatpush1.msra.mxu0 0.0
    %243 = vmatprep.subr.mxu0 0.0
    %244 = vmatpush1.msra.mxu0 0.0
    %245 = vmatprep.subr.mxu0 0.0
    %246 = vmatpush1.msra.mxu0 0.0
    %247 = vmatprep.subr.mxu0 0.0
    %248 = vmatpush1.msra.mxu0 0.0
    %249 = vmatprep.subr.mxu0 0.0
    %250 = vmatpush1.msra.mxu0 0.0
    %251 = vmatprep.subr.mxu0 0.0
    %252 = vmatpush1.msra.mxu0 0.0
    %253 = vmatprep.subr.mxu0 0.0
    %254 = vmatpush1.msra.mxu0 0.0
    %255 = vmatprep.subr.mxu0 0.0
    %256 = vmatpush1.msra.mxu0 0.0
    %257 = vmatprep.subr.mxu0 0.0
    %258 = vmatpush1.msra.mxu0 0.0
    %259 = vmatprep.subr.mxu0 0.0
    %260 = vmatpush1.msra.mxu0 0.0
    %261 = vmatprep.subr.mxu0 0.0
    %262 = vmatpush1.msra.mxu0 0.0
    %263 = vmatprep.subr.mxu0 0.0
    %264 = vmatpush1.msra.mxu0 0.0
    %265 = vmatprep.subr.mxu0 0.0
    %266 = vmatpush1.msra.mxu0 0.0
    %267 = vmatprep.subr.mxu0 0.0
    %268 = vmatpush1.msra.mxu0 0.0
    %269 = vmatprep.subr.mxu0 0.0
    %270 = vmatpush1.msra.mxu0 0.0
    %271 = vmatprep.subr.mxu0 0.0
    %272 = vmatpush1.msra.mxu0 0.0
    %273 = vmatprep.mubr.f32.mxu0 0.0
    %274 = vmatmul.mubr.f32.gmra.mrb[0].mxu0 %v207
    %v275 = vpop.f32.mrb[0].mxu0
    %v276 = vadd.f32 0.0, %v275
    %v277 = vpop.f32.mrb[0].mxu0
    %278 = vdwg.mxu0
    %v279 = vadd.f32 %v205, %v276
    %v280 = vtanh.pop %v279
    %s281 = scalar_lea.vmem [#allocation2], 8
    %v282 = vld [vmem:[%s281] sm:$0xff]
    %v284 = vsel %vm188, %v280, 0
    %286 = vmatprep.subr.mxu0 0.0
    %287 = vmatpush1.msra.mxu0 %v197
    %288 = vmatprep.subr.mxu0 0.0
    %289 = vmatpush1.msra.mxu0 %v198
    %290 = vmatprep.subr.mxu0 0.0
    %291 = vmatpush1.msra.mxu0 %v199
    %292 = vmatprep.subr.mxu0 0.0
    %293 = vmatpush1.msra.mxu0 %v200
    %294 = vmatprep.subr.mxu0 0.0
    %295 = vmatpush1.msra.mxu0 %v201
    %296 = vmatprep.subr.mxu0 0.0
    %297 = vmatpush1.msra.mxu0 %v202
    %298 = vmatprep.subr.mxu0 0.0
    %299 = vmatpush1.msra.mxu0 %v203
    %300 = vmatprep.subr.mxu0 0.0
    %301 = vmatpush1.msra.mxu0 %v204
    %302 = vmatprep.subr.mxu0 0.0
    %303 = vmatpush1.msra.mxu0 0.0
    %304 = vmatprep.subr.mxu0 0.0
    %305 = vmatpush1.msra.mxu0 0.0
    %306 = vmatprep.subr.mxu0 0.0
    %307 = vmatpush1.msra.mxu0 0.0
    %308 = vmatprep.subr.mxu0 0.0
    %309 = vmatpush1.msra.mxu0 0.0
    %310 = vmatprep.subr.mxu0 0.0
    %311 = vmatpush1.msra.mxu0 0.0
    %312 = vmatprep.subr.mxu0 0.0
    %313 = vmatpush1.msra.mxu0 0.0
    %314 = vmatprep.subr.mxu0 0.0
    %315 = vmatpush1.msra.mxu0 0.0
    %316 = vmatprep.subr.mxu0 0.0
    %317 = vmatpush1.msra.mxu0 0.0
    %318 = vmatprep.subr.mxu0 0.0
    %319 = vmatpush1.msra.mxu0 0.0
    %320 = vmatprep.subr.mxu0 0.0
    %321 = vmatpush1.msra.mxu0 0.0
    %322 = vmatprep.subr.mxu0 0.0
    %323 = vmatpush1.msra.mxu0 0.0
    %324 = vmatprep.subr.mxu0 0.0
    %325 = vmatpush1.msra.mxu0 0.0
    %326 = vmatprep.subr.mxu0 0.0
    %327 = vmatpush1.msra.mxu0 0.0
    %328 = vmatprep.subr.mxu0 0.0
    %329 = vmatpush1.msra.mxu0 0.0
    %330 = vmatprep.subr.mxu0 0.0
    %331 = vmatpush1.msra.mxu0 0.0
    %332 = vmatprep.subr.mxu0 0.0
    %333 = vmatpush1.msra.mxu0 0.0
    %334 = vmatprep.subr.mxu0 0.0
    %335 = vmatpush1.msra.mxu0 0.0
    %336 = vmatprep.subr.mxu0 0.0
    %337 = vmatpush1.msra.mxu0 0.0
    %338 = vmatprep.subr.mxu0 0.0
    %339 = vmatpush1.msra.mxu0 0.0
    %340 = vmatprep.subr.mxu0 0.0
    %341 = vmatpush1.msra.mxu0 0.0
    %342 = vmatprep.subr.mxu0 0.0
    %343 = vmatpush1.msra.mxu0 0.0
    %344 = vmatprep.subr.mxu0 0.0
    %345 = vmatpush1.msra.mxu0 0.0
    %346 = vmatprep.subr.mxu0 0.0
    %347 = vmatpush1.msra.mxu0 0.0
    %348 = vmatprep.subr.mxu0 0.0
    %349 = vmatpush1.msra.mxu0 0.0
    %350 = vmatprep.mubr.f32.mxu0 0.0
    %351 = vmatmul.mubr.f32.gmra.mrb[0].mxu0 %v284
    %v352 = vpop.f32.mrb[0].mxu0
    %v353 = vadd.f32 0.0, %v352
    %v354 = vpop.f32.mrb[0].mxu0
    %355 = vdwg.mxu0
    %v356 = vadd.f32 %v282, %v353
    %v357 = vtanh.pop %v356
    %s358 = scalar_lea.vmem [#allocation2], 16
    %v359 = vld [vmem:[%s358] sm:$0xff]
    %v361 = vsel %vm188, %v357, 0
    %363 = vmatprep.subr.mxu0 0.0
    %364 = vmatpush1.msra.mxu0 %v197
    %365 = vmatprep.subr.mxu0 0.0
    %366 = vmatpush1.msra.mxu0 %v198
    %367 = vmatprep.subr.mxu0 0.0
    %368 = vmatpush1.msra.mxu0 %v199
    %369 = vmatprep.subr.mxu0 0.0
    %370 = vmatpush1.msra.mxu0 %v200
    %371 = vmatprep.subr.mxu0 0.0
    %372 = vmatpush1.msra.mxu0 %v201
    %373 = vmatprep.subr.mxu0 0.0
    %374 = vmatpush1.msra.mxu0 %v202
    %375 = vmatprep.subr.mxu0 0.0
    %376 = vmatpush1.msra.mxu0 %v203
    %377 = vmatprep.subr.mxu0 0.0
    %378 = vmatpush1.msra.mxu0 %v204
    %379 = vmatprep.subr.mxu0 0.0
    %380 = vmatpush1.msra.mxu0 0.0
    %381 = vmatprep.subr.mxu0 0.0
    %382 = vmatpush1.msra.mxu0 0.0
    %383 = vmatprep.subr.mxu0 0.0
    %384 = vmatpush1.msra.mxu0 0.0
    %385 = vmatprep.subr.mxu0 0.0
    %386 = vmatpush1.msra.mxu0 0.0
    %387 = vmatprep.subr.mxu0 0.0
    %388 = vmatpush1.msra.mxu0 0.0
    %389 = vmatprep.subr.mxu0 0.0
    %390 = vmatpush1.msra.mxu0 0.0
    %391 = vmatprep.subr.mxu0 0.0
    %392 = vmatpush1.msra.mxu0 0.0
    %393 = vmatprep.subr.mxu0 0.0
    %394 = vmatpush1.msra.mxu0 0.0
    %395 = vmatprep.subr.mxu0 0.0
    %396 = vmatpush1.msra.mxu0 0.0
    %397 = vmatprep.subr.mxu0 0.0
    %398 = vmatpush1.msra.mxu0 0.0
    %399 = vmatprep.subr.mxu0 0.0
    %400 = vmatpush1.msra.mxu0 0.0
    %401 = vmatprep.subr.mxu0 0.0
    %402 = vmatpush1.msra.mxu0 0.0
    %403 = vmatprep.subr.mxu0 0.0
    %404 = vmatpush1.msra.mxu0 0.0
    %405 = vmatprep.subr.mxu0 0.0
    %406 = vmatpush1.msra.mxu0 0.0
    %407 = vmatprep.subr.mxu0 0.0
    %408 = vmatpush1.msra.mxu0 0.0
    %409 = vmatprep.subr.mxu0 0.0
    %410 = vmatpush1.msra.mxu0 0.0
    %411 = vmatprep.subr.mxu0 0.0
    %412 = vmatpush1.msra.mxu0 0.0
    %413 = vmatprep.subr.mxu0 0.0
    %414 = vmatpush1.msra.mxu0 0.0
    %415 = vmatprep.subr.mxu0 0.0
    %416 = vmatpush1.msra.mxu0 0.0
    %417 = vmatprep.subr.mxu0 0.0
    %418 = vmatpush1.msra.mxu0 0.0
    %419 = vmatprep.subr.mxu0 0.0
    %420 = vmatpush1.msra.mxu0 0.0
    %421 = vmatprep.subr.mxu0 0.0
    %422 = vmatpush1.msra.mxu0 0.0
    %423 = vmatprep.subr.mxu0 0.0
    %424 = vmatpush1.msra.mxu0 0.0
    %425 = vmatprep.subr.mxu0 0.0
    %426 = vmatpush1.msra.mxu0 0.0
    %427 = vmatprep.mubr.f32.mxu0 0.0
    %428 = vmatmul.mubr.f32.gmra.mrb[0].mxu0 %v361
    %v429 = vpop.f32.mrb[0].mxu0
    %v430 = vadd.f32 0.0, %v429
    %v431 = vpop.f32.mrb[0].mxu0
    %432 = vdwg.mxu0
    %v433 = vadd.f32 %v359, %v430
    %v434 = vtanh.pop %v433
    %s435 = scalar_lea.vmem [#allocation2], 24
    %v436 = vld [vmem:[%s435] sm:$0xff]
    %v438 = vsel %vm188, %v434, 0
    %440 = vmatprep.subr.mxu0 0.0
    %441 = vmatpush1.msra.mxu0 %v197
    %442 = vmatprep.subr.mxu0 0.0
    %443 = vmatpush1.msra.mxu0 %v198
    %444 = vmatprep.subr.mxu0 0.0
    %445 = vmatpush1.msra.mxu0 %v199
    %446 = vmatprep.subr.mxu0 0.0
    %447 = vmatpush1.msra.mxu0 %v200
    %448 = vmatprep.subr.mxu0 0.0
    %449 = vmatpush1.msra.mxu0 %v201
    %450 = vmatprep.subr.mxu0 0.0
    %451 = vmatpush1.msra.mxu0 %v202
    %452 = vmatprep.subr.mxu0 0.0
    %453 = vmatpush1.msra.mxu0 %v203
    %454 = vmatprep.subr.mxu0 0.0
    %455 = vmatpush1.msra.mxu0 %v204
    %456 = vmatprep.subr.mxu0 0.0
    %457 = vmatpush1.msra.mxu0 0.0
    %458 = vmatprep.subr.mxu0 0.0
    %459 = vmatpush1.msra.mxu0 0.0
    %460 = vmatprep.subr.mxu0 0.0
    %461 = vmatpush1.msra.mxu0 0.0
    %462 = vmatprep.subr.mxu0 0.0
    %463 = vmatpush1.msra.mxu0 0.0
    %464 = vmatprep.subr.mxu0 0.0
    %465 = vmatpush1.msra.mxu0 0.0
    %466 = vmatprep.subr.mxu0 0.0
    %467 = vmatpush1.msra.mxu0 0.0
    %468 = vmatprep.subr.mxu0 0.0
    %469 = vmatpush1.msra.mxu0 0.0
    %470 = vmatprep.subr.mxu0 0.0
    %471 = vmatpush1.msra.mxu0 0.0
    %472 = vmatprep.subr.mxu0 0.0
    %473 = vmatpush1.msra.mxu0 0.0
    %474 = vmatprep.subr.mxu0 0.0
    %475 = vmatpush1.msra.mxu0 0.0
    %476 = vmatprep.subr.mxu0 0.0
    %477 = vmatpush1.msra.mxu0 0.0
    %478 = vmatprep.subr.mxu0 0.0
    %479 = vmatpush1.msra.mxu0 0.0
    %480 = vmatprep.subr.mxu0 0.0
    %481 = vmatpush1.msra.mxu0 0.0
    %482 = vmatprep.subr.mxu0 0.0
    %483 = vmatpush1.msra.mxu0 0.0
    %484 = vmatprep.subr.mxu0 0.0
    %485 = vmatpush1.msra.mxu0 0.0
    %486 = vmatprep.subr.mxu0 0.0
    %487 = vmatpush1.msra.mxu0 0.0
    %488 = vmatprep.subr.mxu0 0.0
    %489 = vmatpush1.msra.mxu0 0.0
    %490 = vmatprep.subr.mxu0 0.0
    %491 = vmatpush1.msra.mxu0 0.0
    %492 = vmatprep.subr.mxu0 0.0
    %493 = vmatpush1.msra.mxu0 0.0
    %494 = vmatprep.subr.mxu0 0.0
    %495 = vmatpush1.msra.mxu0 0.0
    %496 = vmatprep.subr.mxu0 0.0
    %497 = vmatpush1.msra.mxu0 0.0
    %498 = vmatprep.subr.mxu0 0.0
    %499 = vmatpush1.msra.mxu0 0.0
    %500 = vmatprep.subr.mxu0 0.0
    %501 = vmatpush1.msra.mxu0 0.0
    %502 = vmatprep.subr.mxu0 0.0
    %503 = vmatpush1.msra.mxu0 0.0
    %504 = vmatprep.mubr.f32.mxu0 0.0
    %505 = vmatmul.mubr.f32.gmra.mrb[0].mxu0 %v438
    %v506 = vpop.f32.mrb[0].mxu0
    %v507 = vadd.f32 0.0, %v506
    %v508 = vpop.f32.mrb[0].mxu0
    %509 = vdwg.mxu0
    %v510 = vadd.f32 %v436, %v507
    %v511 = vtanh.pop %v510
    %s512 = scalar_lea.vmem [#allocation2], 32
    %v513 = vld [vmem:[%s512] sm:$0xff]
    %v515 = vsel %vm188, %v511, 0
    %517 = vmatprep.subr.mxu0 0.0
    %518 = vmatpush1.msra.mxu0 %v197
    %519 = vmatprep.subr.mxu0 0.0
    %520 = vmatpush1.msra.mxu0 %v198
    %521 = vmatprep.subr.mxu0 0.0
    %522 = vmatpush1.msra.mxu0 %v199
    %523 = vmatprep.subr.mxu0 0.0
    %524 = vmatpush1.msra.mxu0 %v200
    %525 = vmatprep.subr.mxu0 0.0
    %526 = vmatpush1.msra.mxu0 %v201
    %527 = vmatprep.subr.mxu0 0.0
    %528 = vmatpush1.msra.mxu0 %v202
    %529 = vmatprep.subr.mxu0 0.0
    %530 = vmatpush1.msra.mxu0 %v203
    %531 = vmatprep.subr.mxu0 0.0
    %532 = vmatpush1.msra.mxu0 %v204
    %533 = vmatprep.subr.mxu0 0.0
    %534 = vmatpush1.msra.mxu0 0.0
    %535 = vmatprep.subr.mxu0 0.0
    %536 = vmatpush1.msra.mxu0 0.0
    %537 = vmatprep.subr.mxu0 0.0
    %538 = vmatpush1.msra.mxu0 0.0
    %539 = vmatprep.subr.mxu0 0.0
    %540 = vmatpush1.msra.mxu0 0.0
    %541 = vmatprep.subr.mxu0 0.0
    %542 = vmatpush1.msra.mxu0 0.0
    %543 = vmatprep.subr.mxu0 0.0
    %544 = vmatpush1.msra.mxu0 0.0
    %545 = vmatprep.subr.mxu0 0.0
    %546 = vmatpush1.msra.mxu0 0.0
    %547 = vmatprep.subr.mxu0 0.0
    %548 = vmatpush1.msra.mxu0 0.0
    %549 = vmatprep.subr.mxu0 0.0
    %550 = vmatpush1.msra.mxu0 0.0
    %551 = vmatprep.subr.mxu0 0.0
    %552 = vmatpush1.msra.mxu0 0.0
    %553 = vmatprep.subr.mxu0 0.0
    %554 = vmatpush1.msra.mxu0 0.0
    %555 = vmatprep.subr.mxu0 0.0
    %556 = vmatpush1.msra.mxu0 0.0
    %557 = vmatprep.subr.mxu0 0.0
    %558 = vmatpush1.msra.mxu0 0.0
    %559 = vmatprep.subr.mxu0 0.0
    %560 = vmatpush1.msra.mxu0 0.0
    %561 = vmatprep.subr.mxu0 0.0
    %562 = vmatpush1.msra.mxu0 0.0
    %563 = vmatprep.subr.mxu0 0.0
    %564 = vmatpush1.msra.mxu0 0.0
    %565 = vmatprep.subr.mxu0 0.0
    %566 = vmatpush1.msra.mxu0 0.0
    %567 = vmatprep.subr.mxu0 0.0
    %568 = vmatpush1.msra.mxu0 0.0
    %569 = vmatprep.subr.mxu0 0.0
    %570 = vmatpush1.msra.mxu0 0.0
    %571 = vmatprep.subr.mxu0 0.0
    %572 = vmatpush1.msra.mxu0 0.0
    %573 = vmatprep.subr.mxu0 0.0
    %574 = vmatpush1.msra.mxu0 0.0
    %575 = vmatprep.subr.mxu0 0.0
    %576 = vmatpush1.msra.mxu0 0.0
    %577 = vmatprep.subr.mxu0 0.0
    %578 = vmatpush1.msra.mxu0 0.0
    %579 = vmatprep.subr.mxu0 0.0
    %580 = vmatpush1.msra.mxu0 0.0
    %581 = vmatprep.mubr.f32.mxu0 0.0
    %582 = vmatmul.mubr.f32.gmra.mrb[0].mxu0 %v515
    %v583 = vpop.f32.mrb[0].mxu0
    %v584 = vadd.f32 0.0, %v583
    %v585 = vpop.f32.mrb[0].mxu0
    %586 = vdwg.mxu0
    %v587 = vadd.f32 %v513, %v584
    %v588 = vtanh.pop %v587
    %s589 = scalar_lea.vmem [#allocation2], 40
    %v590 = vld [vmem:[%s589] sm:$0xff]
    %v592 = vsel %vm188, %v588, 0
    %594 = vmatprep.subr.mxu0 0.0
    %595 = vmatpush1.msra.mxu0 %v197
    %596 = vmatprep.subr.mxu0 0.0
    %597 = vmatpush1.msra.mxu0 %v198
    %598 = vmatprep.subr.mxu0 0.0
    %599 = vmatpush1.msra.mxu0 %v199
    %600 = vmatprep.subr.mxu0 0.0
    %601 = vmatpush1.msra.mxu0 %v200
    %602 = vmatprep.subr.mxu0 0.0
    %603 = vmatpush1.msra.mxu0 %v201
    %604 = vmatprep.subr.mxu0 0.0
    %605 = vmatpush1.msra.mxu0 %v202
    %606 = vmatprep.subr.mxu0 0.0
    %607 = vmatpush1.msra.mxu0 %v203
    %608 = vmatprep.subr.mxu0 0.0
    %609 = vmatpush1.msra.mxu0 %v204
    %610 = vmatprep.subr.mxu0 0.0
    %611 = vmatpush1.msra.mxu0 0.0
    %612 = vmatprep.subr.mxu0 0.0
    %613 = vmatpush1.msra.mxu0 0.0
    %614 = vmatprep.subr.mxu0 0.0
    %615 = vmatpush1.msra.mxu0 0.0
    %616 = vmatprep.subr.mxu0 0.0
    %617 = vmatpush1.msra.mxu0 0.0
    %618 = vmatprep.subr.mxu0 0.0
    %619 = vmatpush1.msra.mxu0 0.0
    %620 = vmatprep.subr.mxu0 0.0
    %621 = vmatpush1.msra.mxu0 0.0
    %622 = vmatprep.subr.mxu0 0.0
    %623 = vmatpush1.msra.mxu0 0.0
    %624 = vmatprep.subr.mxu0 0.0
    %625 = vmatpush1.msra.mxu0 0.0
    %626 = vmatprep.subr.mxu0 0.0
    %627 = vmatpush1.msra.mxu0 0.0
    %628 = vmatprep.subr.mxu0 0.0
    %629 = vmatpush1.msra.mxu0 0.0
    %630 = vmatprep.subr.mxu0 0.0
    %631 = vmatpush1.msra.mxu0 0.0
    %632 = vmatprep.subr.mxu0 0.0
    %633 = vmatpush1.msra.mxu0 0.0
    %634 = vmatprep.subr.mxu0 0.0
    %635 = vmatpush1.msra.mxu0 0.0
    %636 = vmatprep.subr.mxu0 0.0
    %637 = vmatpush1.msra.mxu0 0.0
    %638 = vmatprep.subr.mxu0 0.0
    %639 = vmatpush1.msra.mxu0 0.0
    %640 = vmatprep.subr.mxu0 0.0
    %641 = vmatpush1.msra.mxu0 0.0
    %642 = vmatprep.subr.mxu0 0.0
    %643 = vmatpush1.msra.mxu0 0.0
    %644 = vmatprep.subr.mxu0 0.0
    %645 = vmatpush1.msra.mxu0 0.0
    %646 = vmatprep.subr.mxu0 0.0
    %647 = vmatpush1.msra.mxu0 0.0
    %648 = vmatprep.subr.mxu0 0.0
    %649 = vmatpush1.msra.mxu0 0.0
    %650 = vmatprep.subr.mxu0 0.0
    %651 = vmatpush1.msra.mxu0 0.0
    %652 = vmatprep.subr.mxu0 0.0
    %653 = vmatpush1.msra.mxu0 0.0
    %654 = vmatprep.subr.mxu0 0.0
    %655 = vmatpush1.msra.mxu0 0.0
    %656 = vmatprep.subr.mxu0 0.0
    %657 = vmatpush1.msra.mxu0 0.0
    %658 = vmatprep.mubr.f32.mxu0 0.0
    %659 = vmatmul.mubr.f32.gmra.mrb[0].mxu0 %v592
    %v660 = vpop.f32.mrb[0].mxu0
    %v661 = vadd.f32 0.0, %v660
    %v662 = vpop.f32.mrb[0].mxu0
    %663 = vdwg.mxu0
    %v664 = vadd.f32 %v590, %v661
    %v665 = vtanh.pop %v664
    %s666 = scalar_lea.vmem [#allocation2], 48
    %v667 = vld [vmem:[%s666] sm:$0xff]
    %v669 = vsel %vm188, %v665, 0
    %671 = vmatprep.subr.mxu0 0.0
    %672 = vmatpush1.msra.mxu0 %v197
    %673 = vmatprep.subr.mxu0 0.0
    %674 = vmatpush1.msra.mxu0 %v198
    %675 = vmatprep.subr.mxu0 0.0
    %676 = vmatpush1.msra.mxu0 %v199
    %677 = vmatprep.subr.mxu0 0.0
    %678 = vmatpush1.msra.mxu0 %v200
    %679 = vmatprep.subr.mxu0 0.0
    %680 = vmatpush1.msra.mxu0 %v201
    %681 = vmatprep.subr.mxu0 0.0
    %682 = vmatpush1.msra.mxu0 %v202
    %683 = vmatprep.subr.mxu0 0.0
    %684 = vmatpush1.msra.mxu0 %v203
    %685 = vmatprep.subr.mxu0 0.0
    %686 = vmatpush1.msra.mxu0 %v204
    %687 = vmatprep.subr.mxu0 0.0
    %688 = vmatpush1.msra.mxu0 0.0
    %689 = vmatprep.subr.mxu0 0.0
    %690 = vmatpush1.msra.mxu0 0.0
    %691 = vmatprep.subr.mxu0 0.0
    %692 = vmatpush1.msra.mxu0 0.0
    %693 = vmatprep.subr.mxu0 0.0
    %694 = vmatpush1.msra.mxu0 0.0
    %695 = vmatprep.subr.mxu0 0.0
    %696 = vmatpush1.msra.mxu0 0.0
    %697 = vmatprep.subr.mxu0 0.0
    %698 = vmatpush1.msra.mxu0 0.0
    %699 = vmatprep.subr.mxu0 0.0
    %700 = vmatpush1.msra.mxu0 0.0
    %701 = vmatprep.subr.mxu0 0.0
    %702 = vmatpush1.msra.mxu0 0.0
    %703 = vmatprep.subr.mxu0 0.0
    %704 = vmatpush1.msra.mxu0 0.0
    %705 = vmatprep.subr.mxu0 0.0
    %706 = vmatpush1.msra.mxu0 0.0
    %707 = vmatprep.subr.mxu0 0.0
    %708 = vmatpush1.msra.mxu0 0.0
    %709 = vmatprep.subr.mxu0 0.0
    %710 = vmatpush1.msra.mxu0 0.0
    %711 = vmatprep.subr.mxu0 0.0
    %712 = vmatpush1.msra.mxu0 0.0
    %713 = vmatprep.subr.mxu0 0.0
    %714 = vmatpush1.msra.mxu0 0.0
    %715 = vmatprep.subr.mxu0 0.0
    %716 = vmatpush1.msra.mxu0 0.0
    %717 = vmatprep.subr.mxu0 0.0
    %718 = vmatpush1.msra.mxu0 0.0
    %719 = vmatprep.subr.mxu0 0.0
    %720 = vmatpush1.msra.mxu0 0.0
    %721 = vmatprep.subr.mxu0 0.0
    %722 = vmatpush1.msra.mxu0 0.0
    %723 = vmatprep.subr.mxu0 0.0
    %724 = vmatpush1.msra.mxu0 0.0
    %725 = vmatprep.subr.mxu0 0.0
    %726 = vmatpush1.msra.mxu0 0.0
    %727 = vmatprep.subr.mxu0 0.0
    %728 = vmatpush1.msra.mxu0 0.0
    %729 = vmatprep.subr.mxu0 0.0
    %730 = vmatpush1.msra.mxu0 0.0
    %731 = vmatprep.subr.mxu0 0.0
    %732 = vmatpush1.msra.mxu0 0.0
    %733 = vmatprep.subr.mxu0 0.0
    %734 = vmatpush1.msra.mxu0 0.0
    %735 = vmatprep.mubr.f32.mxu0 0.0
    %736 = vmatmul.mubr.f32.gmra.mrb[0].mxu0 %v669
    %v737 = vpop.f32.mrb[0].mxu0
    %v738 = vadd.f32 0.0, %v737
    %v739 = vpop.f32.mrb[0].mxu0
    %740 = vdwg.mxu0
    %v741 = vadd.f32 %v667, %v738
    %v742 = vtanh.pop %v741
    %s743 = scalar_lea.vmem [#allocation2], 56
    %v744 = vld [vmem:[%s743] sm:$0xff]
    %v746 = vsel %vm188, %v742, 0
    %748 = vmatprep.subr.mxu0 0.0
    %749 = vmatpush1.msra.mxu0 %v197
    %750 = vmatprep.subr.mxu0 0.0
    %751 = vmatpush1.msra.mxu0 %v198
    %752 = vmatprep.subr.mxu0 0.0
    %753 = vmatpush1.msra.mxu0 %v199
    %754 = vmatprep.subr.mxu0 0.0
    %755 = vmatpush1.msra.mxu0 %v200
    %756 = vmatprep.subr.mxu0 0.0
    %757 = vmatpush1.msra.mxu0 %v201
    %758 = vmatprep.subr.mxu0 0.0
    %759 = vmatpush1.msra.mxu0 %v202
    %760 = vmatprep.subr.mxu0 0.0
    %761 = vmatpush1.msra.mxu0 %v203
    %762 = vmatprep.subr.mxu0 0.0
    %763 = vmatpush1.msra.mxu0 %v204
    %764 = vmatprep.subr.mxu0 0.0
    %765 = vmatpush1.msra.mxu0 0.0
    %766 = vmatprep.subr.mxu0 0.0
    %767 = vmatpush1.msra.mxu0 0.0
    %768 = vmatprep.subr.mxu0 0.0
    %769 = vmatpush1.msra.mxu0 0.0
    %770 = vmatprep.subr.mxu0 0.0
    %771 = vmatpush1.msra.mxu0 0.0
    %772 = vmatprep.subr.mxu0 0.0
    %773 = vmatpush1.msra.mxu0 0.0
    %774 = vmatprep.subr.mxu0 0.0
    %775 = vmatpush1.msra.mxu0 0.0
    %776 = vmatprep.subr.mxu0 0.0
    %777 = vmatpush1.msra.mxu0 0.0
    %778 = vmatprep.subr.mxu0 0.0
    %779 = vmatpush1.msra.mxu0 0.0
    %780 = vmatprep.subr.mxu0 0.0
    %781 = vmatpush1.msra.mxu0 0.0
    %782 = vmatprep.subr.mxu0 0.0
    %783 = vmatpush1.msra.mxu0 0.0
    %784 = vmatprep.subr.mxu0 0.0
    %785 = vmatpush1.msra.mxu0 0.0
    %786 = vmatprep.subr.mxu0 0.0
    %787 = vmatpush1.msra.mxu0 0.0
    %788 = vmatprep.subr.mxu0 0.0
    %789 = vmatpush1.msra.mxu0 0.0
    %790 = vmatprep.subr.mxu0 0.0
    %791 = vmatpush1.msra.mxu0 0.0
    %792 = vmatprep.subr.mxu0 0.0
    %793 = vmatpush1.msra.mxu0 0.0
    %794 = vmatprep.subr.mxu0 0.0
    %795 = vmatpush1.msra.mxu0 0.0
    %796 = vmatprep.subr.mxu0 0.0
    %797 = vmatpush1.msra.mxu0 0.0
    %798 = vmatprep.subr.mxu0 0.0
    %799 = vmatpush1.msra.mxu0 0.0
    %800 = vmatprep.subr.mxu0 0.0
    %801 = vmatpush1.msra.mxu0 0.0
    %802 = vmatprep.subr.mxu0 0.0
    %803 = vmatpush1.msra.mxu0 0.0
    %804 = vmatprep.subr.mxu0 0.0
    %805 = vmatpush1.msra.mxu0 0.0
    %806 = vmatprep.subr.mxu0 0.0
    %807 = vmatpush1.msra.mxu0 0.0
    %808 = vmatprep.subr.mxu0 0.0
    %809 = vmatpush1.msra.mxu0 0.0
    %810 = vmatprep.subr.mxu0 0.0
    %811 = vmatpush1.msra.mxu0 0.0
    %812 = vmatprep.mubr.f32.mxu0 0.0
    %813 = vmatmul.mubr.f32.gmra.mrb[0].mxu0 %v746
    %v814 = vpop.f32.mrb[0].mxu0
    %v815 = vadd.f32 0.0, %v814
    %v816 = vpop.f32.mrb[0].mxu0
    %817 = vdwg.mxu0
    %v818 = vadd.f32 %v744, %v815
    %v819 = vtanh.pop %v818
    %v820 = vld [vmem:[#allocation3] sm:$0xff]
    %v821 = vld [vmem:[#allocation3 + $0x8] sm:$0xff]
    %v822 = vld [vmem:[#allocation3 + $0x10] sm:$0xff]
    %v823 = vld [vmem:[#allocation3 + $0x18] sm:$0xff]
    %v824 = vld [vmem:[#allocation3 + $0x20] sm:$0xff]
    %v825 = vld [vmem:[#allocation3 + $0x28] sm:$0xff]
    %v826 = vld [vmem:[#allocation3 + $0x30] sm:$0xff]
    %v827 = vld [vmem:[#allocation3 + $0x38] sm:$0xff]
    %v828 = vld [vmem:[%s5] sm:$0x1]
    %v830 = vlaneseq
    %v831 = vshrl.u32 %v830, 7
    %v832 = vsub.s32 0, %v831
    %v833 = vrot.slane %v828, %v832
    %v836 = vsel %vm188, %v819, 0
    %838 = vmatprep.subr.mxu0 0.0
    %839 = vmatpush1.msra.mxu0 %v820
    %840 = vmatprep.subr.mxu0 0.0
    %841 = vmatpush1.msra.mxu0 %v821
    %842 = vmatprep.subr.mxu0 0.0
    %843 = vmatpush1.msra.mxu0 %v822
    %844 = vmatprep.subr.mxu0 0.0
    %845 = vmatpush1.msra.mxu0 %v823
    %846 = vmatprep.subr.mxu0 0.0
    %847 = vmatpush1.msra.mxu0 %v824
    %848 = vmatprep.subr.mxu0 0.0
    %849 = vmatpush1.msra.mxu0 %v825
    %850 = vmatprep.subr.mxu0 0.0
    %851 = vmatpush1.msra.mxu0 %v826
    %852 = vmatprep.subr.mxu0 0.0
    %853 = vmatpush1.msra.mxu0 %v827
    %854 = vmatprep.subr.mxu0 0.0
    %855 = vmatpush1.msra.mxu0 0.0
    %856 = vmatprep.subr.mxu0 0.0
    %857 = vmatpush1.msra.mxu0 0.0
    %858 = vmatprep.subr.mxu0 0.0
    %859 = vmatpush1.msra.mxu0 0.0
    %860 = vmatprep.subr.mxu0 0.0
    %861 = vmatpush1.msra.mxu0 0.0
    %862 = vmatprep.subr.mxu0 0.0
    %863 = vmatpush1.msra.mxu0 0.0
    %864 = vmatprep.subr.mxu0 0.0
    %865 = vmatpush1.msra.mxu0 0.0
    %866 = vmatprep.subr.mxu0 0.0
    %867 = vmatpush1.msra.mxu0 0.0
    %868 = vmatprep.subr.mxu0 0.0
    %869 = vmatpush1.msra.mxu0 0.0
    %870 = vmatprep.subr.mxu0 0.0
    %871 = vmatpush1.msra.mxu0 0.0
    %872 = vmatprep.subr.mxu0 0.0
    %873 = vmatpush1.msra.mxu0 0.0
    %874 = vmatprep.subr.mxu0 0.0
    %875 = vmatpush1.msra.mxu0 0.0
    %876 = vmatprep.subr.mxu0 0.0
    %877 = vmatpush1.msra.mxu0 0.0
    %878 = vmatprep.subr.mxu0 0.0
    %879 = vmatpush1.msra.mxu0 0.0
    %880 = vmatprep.subr.mxu0 0.0
    %881 = vmatpush1.msra.mxu0 0.0
    %882 = vmatprep.subr.mxu0 0.0
    %883 = vmatpush1.msra.mxu0 0.0
    %884 = vmatprep.subr.mxu0 0.0
    %885 = vmatpush1.msra.mxu0 0.0
    %886 = vmatprep.subr.mxu0 0.0
    %887 = vmatpush1.msra.mxu0 0.0
    %888 = vmatprep.subr.mxu0 0.0
    %889 = vmatpush1.msra.mxu0 0.0
    %890 = vmatprep.subr.mxu0 0.0
    %891 = vmatpush1.msra.mxu0 0.0
    %892 = vmatprep.subr.mxu0 0.0
    %893 = vmatpush1.msra.mxu0 0.0
    %894 = vmatprep.subr.mxu0 0.0
    %895 = vmatpush1.msra.mxu0 0.0
    %896 = vmatprep.subr.mxu0 0.0
    %897 = vmatpush1.msra.mxu0 0.0
    %898 = vmatprep.subr.mxu0 0.0
    %899 = vmatpush1.msra.mxu0 0.0
    %900 = vmatprep.subr.mxu0 0.0
    %901 = vmatpush1.msra.mxu0 0.0
    %902 = vmatprep.mubr.f32.mxu0 0.0
    %903 = vmatmul.mubr.f32.gmra.mrb[0].mxu0 %v836
    %v904 = vpop.f32.mrb[0].mxu0
    %v905 = vadd.f32 %v833, %v904
    %v906 = vpop.f32.mrb[0].mxu0
    %907 = vdwg.mxu0
    %908 = vst [vmem:[#allocation6] sm:$0xff] %v905
    // Predicated region
    $region30: #{tpu_custom_call.1} parent=1 // pred_check
      _
    $region31: #{tpu_custom_call.1} parent=1 // pred_check_branch
      %910 = sbr.rel (0) target = $region33
    $region32: #{tpu_custom_call.1} parent=1 // pred_region
      %s912 = ssub.s32 128, 128
      %913 = vsyncadd [#allocation5], %s912
      %s915 = sshll.u32 [#allocation6], 4
      %s916 = int_to_ptr.vmem [resolvable:$true] %s915
      %918 = dma.vmem_to_hbm [thread:$0]  %s916, 128, %s6, [#allocation5]
    $region33: #{tpu_custom_call.1} parent=1 // pred_fallthru
      _
    // Predicated region
    $region34: #{tpu_custom_call.1} parent=1 // pred_check
      _
    $region35: #{tpu_custom_call.1} parent=1 // pred_check_branch
      %920 = sbr.rel (0) target = $region37
    $region36: #{tpu_custom_call.1} parent=1 // pred_region
      %921 = dma.done [#allocation5], 128
    $region37: #{tpu_custom_call.1} parent=1 // pred_fallthru
      _
    %922 = vsyncpa [#allocation4], 1
    %923 = vsyncpa [#allocation5], 1

</llo_original>
